<compile_context>
chip_gen: v7x
topology: tpu7x:2x2x1
jax: 0.10.0
libtpu: 0.0.40
codegen_flags: <defaults>
</compile_context>

<pallas_src>
import functools

import jax
import jax.numpy as jnp
from jax.experimental import pallas as pl
from jax.experimental.pallas import tpu as pltpu


# ---------------------------------------------------------------------------
# Kernels
# ---------------------------------------------------------------------------
def _fused_kernel(s_ref, a_ref,
                  ow1_ref, ow2_ref, ow3_ref,
                  tw1s_ref, tw1a_ref, tw2_ref, tw3_ref,
                  bias_ref,
                  obs_out_ref, next_out_ref, vars_out_ref,
                  *, hidden, n_obs, n_states, n_actions, action_is_onehot):
    f32 = jnp.float32
    s = s_ref[...].astype(f32)                     # [TB, S]
    bias = bias_ref[...].astype(f32)               # [8, W] packed biases/log-vars
    b_o1 = bias[0:1, :hidden]
    b_o2 = bias[1:2, :hidden]
    b_o3 = bias[2:3, :n_obs]
    lv = bias[3:4, :n_obs + n_states]              # [obs_log_var | trans_log_var]
    b_t1 = bias[4:5, :hidden]
    b_t2 = bias[5:6, :hidden]
    b_t3 = bias[6:7, :n_states]

    # --- observation branch: relu(s@W1+b1) -> relu(@W2+b2) -> @W3+b3
    h = jnp.maximum(jnp.dot(s, ow1_ref[...], preferred_element_type=f32) + b_o1, 0.0)
    h = jnp.maximum(jnp.dot(h, ow2_ref[...], preferred_element_type=f32) + b_o2, 0.0)
    obs_mean = jnp.dot(h, ow3_ref[...], preferred_element_type=f32) + b_o3

    # --- transition branch: concat([s, onehot]) @ W1 == s @ W1_s + onehot @ W1_a
    if action_is_onehot:
        a_onehot = a_ref[...].astype(f32)          # [TB, A] one-hot / distribution
    else:
        ids = a_ref[...]                           # [TB, 1] int32 action indices
        iota = jax.lax.broadcasted_iota(jnp.int32, (ids.shape[0], n_actions), 1)
        a_onehot = (iota == ids).astype(f32)
    t = (jnp.dot(s, tw1s_ref[...], preferred_element_type=f32)
         + jnp.dot(a_onehot, tw1a_ref[...], preferred_element_type=f32)
         + b_t1)
    t = jnp.maximum(t, 0.0)
    t = jnp.maximum(jnp.dot(t, tw2_ref[...], preferred_element_type=f32) + b_t2, 0.0)
    next_mean = jnp.dot(t, tw3_ref[...], preferred_element_type=f32) + b_t3

    tb = s.shape[0]
    obs_out_ref[...] = obs_mean.astype(obs_out_ref.dtype)
    next_out_ref[...] = next_mean.astype(next_out_ref.dtype)
    vars_out_ref[...] = jnp.broadcast_to(jnp.exp(lv),
                                         (tb, n_obs + n_states)).astype(vars_out_ref.dtype)


def _obs_kernel(s_ref, w1_ref, w2_ref, w3_ref, bias_ref,
                obs_out_ref, vars_out_ref, *, hidden, n_obs):
    f32 = jnp.float32
    s = s_ref[...].astype(f32)
    bias = bias_ref[...].astype(f32)
    b1 = bias[0:1, :hidden]
    b2 = bias[1:2, :hidden]
    b3 = bias[2:3, :n_obs]
    lv = bias[3:4, :n_obs]
    h = jnp.maximum(jnp.dot(s, w1_ref[...], preferred_element_type=f32) + b1, 0.0)
    h = jnp.maximum(jnp.dot(h, w2_ref[...], preferred_element_type=f32) + b2, 0.0)
    mean = jnp.dot(h, w3_ref[...], preferred_element_type=f32) + b3
    obs_out_ref[...] = mean.astype(obs_out_ref.dtype)
    vars_out_ref[...] = jnp.broadcast_to(jnp.exp(lv),
                                         (s.shape[0], n_obs)).astype(vars_out_ref.dtype)


# ---------------------------------------------------------------------------
# Wrappers (pallas_call setup)
# ---------------------------------------------------------------------------
def _round_up(x, m):
    return (x + m - 1) // m * m


def _batch_tiling(batch):
    """Batch tile (multiple of 8 sublanes) and padded batch size."""
    tb = 512 if batch >= 512 else _round_up(max(batch, 1), 8)
    return tb, _round_up(max(batch, 1), tb)


_COMPILER_PARAMS = pltpu.CompilerParams(
    dimension_semantics=("parallel",),      # v7x: shard batch tiles over both TCs
    vmem_limit_bytes=32 * 1024 * 1024,      # explicit; safe on v5e/v6e/v7x
)

_PINNED = lambda i: (0, 0)                  # weight blocks stay VMEM-resident
_TILED = lambda i: (i, 0)                   # batch-tiled activations/outputs


def _fused_forward(packed, s_b, a_mat, action_is_onehot, *,
                   num_states, num_observations, num_actions, hidden_dim):
    S, O, A, H = num_states, num_observations, num_actions, hidden_dim
    batch = s_b.shape[0]
    tb, b_pad = _batch_tiling(batch)
    grid = (b_pad // tb,)
    dtype = s_b.dtype
    a_width = a_mat.shape[1]
    W = packed["bias_pack"].shape[1]

    s_p = jnp.pad(s_b, ((0, b_pad - batch), (0, 0)))
    a_p = jnp.pad(a_mat, ((0, b_pad - batch), (0, 0)))

    kernel = functools.partial(_fused_kernel, hidden=H, n_obs=O, n_states=S,
                               n_actions=A, action_is_onehot=action_is_onehot)

    flops = (2 * b_pad * (S * H + H * H + H * O)
             + 2 * b_pad * (S * H + A * H + H * H + H * S))
    bytes_accessed = 4 * (b_pad * (S + a_width + 2 * O + 2 * S)
                          + 2 * S * H + A * H + 2 * H * H + H * O + H * S + 8 * W)

    obs_mean, next_mean, vars_row = pl.pallas_call(
        kernel,
        out_shape=(
            jax.ShapeDtypeStruct((b_pad, O), dtype),
            jax.ShapeDtypeStruct((b_pad, S), dtype),
            jax.ShapeDtypeStruct((b_pad, O + S), dtype),
        ),
        grid=grid,
        in_specs=[
            pl.BlockSpec((tb, S), _TILED),        # states
            pl.BlockSpec((tb, a_width), _TILED),  # action ids [TB,1] or one-hot [TB,A]
            pl.BlockSpec((S, H), _PINNED),        # obs_w1
            pl.BlockSpec((H, H), _PINNED),        # obs_w2
            pl.BlockSpec((H, O), _PINNED),        # obs_w3
            pl.BlockSpec((S, H), _PINNED),        # trans_w1 (state rows)
            pl.BlockSpec((A, H), _PINNED),        # trans_w1 (action rows)
            pl.BlockSpec((H, H), _PINNED),        # trans_w2
            pl.BlockSpec((H, S), _PINNED),        # trans_w3
            pl.BlockSpec((8, W), _PINNED),        # packed biases + log-vars
        ],
        out_specs=(
            pl.BlockSpec((tb, O), _TILED),
            pl.BlockSpec((tb, S), _TILED),
            pl.BlockSpec((tb, O + S), _TILED),
        ),
        compiler_params=_COMPILER_PARAMS,
        cost_estimate=pl.CostEstimate(flops=flops, transcendentals=O + S,
                                      bytes_accessed=bytes_accessed),
    )(s_p, a_p,
      packed["obs_w1"], packed["obs_w2"], packed["obs_w3"],
      packed["trans_w1s"], packed["trans_w1a"], packed["trans_w2"], packed["trans_w3"],
      packed["bias_pack"])

    return (obs_mean[:batch], next_mean[:batch],
            vars_row[0, :O], vars_row[0, O:O + S])


def _obs_forward(packed, s2d, *, num_states, num_observations, hidden_dim):
    S, O, H = num_states, num_observations, hidden_dim
    batch = s2d.shape[0]
    tb, b_pad = _batch_tiling(batch)
    grid = (b_pad // tb,)
    dtype = s2d.dtype
    W = packed["bias_pack"].shape[1]
    s_p = jnp.pad(s2d, ((0, b_pad - batch), (0, 0)))

    kernel = functools.partial(_obs_kernel, hidden=H, n_obs=O)
    flops = 2 * b_pad * (S * H + H * H + H * O)
    bytes_accessed = 4 * (b_pad * (S + 2 * O) + S * H + H * H + H * O + 8 * W)

    obs_mean, vars_row = pl.pallas_call(
        kernel,
        out_shape=(jax.ShapeDtypeStruct((b_pad, O), dtype),
                   jax.ShapeDtypeStruct((b_pad, O), dtype)),
        grid=grid,
        in_specs=[
            pl.BlockSpec((tb, S), _TILED),
            pl.BlockSpec((S, H), _PINNED),
            pl.BlockSpec((H, H), _PINNED),
            pl.BlockSpec((H, O), _PINNED),
            pl.BlockSpec((8, W), _PINNED),
        ],
        out_specs=(pl.BlockSpec((tb, O), _TILED),
                   pl.BlockSpec((tb, O), _TILED)),
        compiler_params=_COMPILER_PARAMS,
        cost_estimate=pl.CostEstimate(flops=flops, transcendentals=O,
                                      bytes_accessed=bytes_accessed),
    )(s_p, packed["obs_w1"], packed["obs_w2"], packed["obs_w3"], packed["bias_pack"])
    return obs_mean[:batch], vars_row[0]


# ---------------------------------------------------------------------------
# Parameter init (synthetic, mirrors __init__ shapes) + kernel-layout packing
# ---------------------------------------------------------------------------
def init_params(key, num_states, num_observations, num_actions, time_horizon,
                hidden_dim, dtype=jnp.float32):
    ks = jax.random.split(key, 12)

    def linear(kw, kb, din, dout):
        bound = 1.0 / (din ** 0.5)   # PyTorch-like uniform init, [in, out] layout
        w = jax.random.uniform(kw, (din, dout), dtype, -bound, bound)
        b = jax.random.uniform(kb, (dout,), dtype, -bound, bound)
        return w, b

    p = {}
    p["obs_w1"], p["obs_b1"] = linear(ks[0], ks[1], num_states, hidden_dim)
    p["obs_w2"], p["obs_b2"] = linear(ks[2], ks[3], hidden_dim, hidden_dim)
    p["obs_w3"], p["obs_b3"] = linear(ks[4], ks[5], hidden_dim, num_observations)
    p["obs_log_var"] = jnp.zeros((num_observations,), dtype)
    p["trans_w1"], p["trans_b1"] = linear(ks[6], ks[7], num_states + num_actions, hidden_dim)
    p["trans_w2"], p["trans_b2"] = linear(ks[8], ks[9], hidden_dim, hidden_dim)
    p["trans_w3"], p["trans_b3"] = linear(ks[10], ks[11], hidden_dim, num_states)
    p["trans_log_var"] = jnp.zeros((num_states,), dtype)
    # PyMDP-style parameters (not used in forward(); kept for shape fidelity)
    p["C"] = jnp.zeros((num_observations, time_horizon), dtype)
    p["D_mean"] = jnp.zeros((num_states,), dtype)
    p["D_log_var"] = jnp.zeros((num_states,), dtype)
    return p


def pack_params(params, num_states, num_observations, num_actions, hidden_dim):
    """One-time repack into the kernel-friendly layout (split W1, packed biases)."""
    W = max(hidden_dim, num_observations, num_states, num_observations + num_states)
    dtype = params["obs_w1"].dtype

    def row(v):
        return jnp.pad(v.astype(dtype), (0, W - v.shape[0]))

    log_var_row = jnp.concatenate([params["obs_log_var"], params["trans_log_var"]])
    bias_pack = jnp.stack([
        row(params["obs_b1"]), row(params["obs_b2"]), row(params["obs_b3"]),
        row(log_var_row),
        row(params["trans_b1"]), row(params["trans_b2"]), row(params["trans_b3"]),
        jnp.zeros((W,), dtype),
    ])
    return {
        "obs_w1": params["obs_w1"], "obs_w2": params["obs_w2"], "obs_w3": params["obs_w3"],
        "trans_w1s": params["trans_w1"][:num_states],
        "trans_w1a": params["trans_w1"][num_states:num_states + num_actions],
        "trans_w2": params["trans_w2"], "trans_w3": params["trans_w3"],
        "bias_pack": bias_pack,
    }


# ---------------------------------------------------------------------------
# forward(states, actions) — ContinuousGenerativeModel.forward semantics
# ---------------------------------------------------------------------------
def forward(packed, states, actions=None, *,
            num_states, num_observations, num_actions, hidden_dim):
    outputs = {}
    O, S, A = num_observations, num_states, num_actions

    states_was_1d = states.ndim == 1
    s2d = states[None, :] if states_was_1d else states

    if actions is None:
        obs_mean, obs_var = _obs_forward(packed, s2d, num_states=S,
                                         num_observations=O, hidden_dim=hidden_dim)
        # PyTorch squeezes whenever the (post-unsqueeze) batch is 1.
        outputs["obs_mean"] = obs_mean[0] if s2d.shape[0] == 1 else obs_mean
        outputs["obs_var"] = obs_var
        return outputs

    # --- action normalization (mirrors the PyTorch branches at trace time) ---
    a = actions
    actions_was_1d = ((a.ndim == 1 and (a.shape[0] == 1 or a.shape[0] == A))
                      or (a.ndim == 2 and a.shape[0] == 1))
    if a.ndim == 2 and a.shape[-1] == 1:
        a = a[:, 0]
    if a.ndim == 1 and a.shape[0] == A and jnp.issubdtype(a.dtype, jnp.floating):
        # TODO(synk): PyTorch also checks torch.allclose(actions.sum(), 1.0) at runtime;
        # that data-dependent branch is assumed true for 1D float actions of length A.
        a_mat = a[None, :].astype(s2d.dtype)
        action_is_onehot = True
    elif a.ndim > 1 and a.shape[-1] == A:
        a_mat = a.astype(s2d.dtype)
        action_is_onehot = True
    else:
        a_flat = a.reshape(-1) if a.ndim > 1 else jnp.atleast_1d(a)
        a_mat = a_flat.astype(jnp.int32)[:, None]
        action_is_onehot = False

    s_b = s2d
    if s_b.shape[0] != a_mat.shape[0]:
        if s_b.shape[0] == 1:
            s_b = jnp.broadcast_to(s_b, (a_mat.shape[0], s_b.shape[1]))
        else:
            raise ValueError(
                f"Batch size mismatch: states ({s_b.shape[0]}) and actions ({a_mat.shape[0]})")

    obs_mean, next_mean, obs_var, next_var = _fused_forward(
        packed, s_b, a_mat, action_is_onehot,
        num_states=S, num_observations=O, num_actions=A, hidden_dim=hidden_dim)

    # observation_model squeezes when the (post-unsqueeze) states batch is 1.
    outputs["obs_mean"] = obs_mean[0] if s2d.shape[0] == 1 else obs_mean[:s2d.shape[0]]
    outputs["obs_var"] = obs_var
    # transition_model: squeeze(0) only when both were "1d" AND batch is 1 (torch
    # squeeze(0) is a no-op otherwise).
    if states_was_1d and actions_was_1d and next_mean.shape[0] == 1:
        next_mean = next_mean[0]
    outputs["next_mean"] = next_mean
    outputs["next_var"] = next_var
    return outputs


# Pure-JAX reference (silent correctness check of the Pallas path).
def _ref_mlp3(x, w1, b1, w2, b2, w3, b3):
    h1 = jnp.maximum(x @ w1 + b1, 0.0)
    h2 = jnp.maximum(h1 @ w2 + b2, 0.0)
    return h2 @ w3 + b3


if __name__ == "__main__":
    NUM_STATES = 8
    NUM_OBS = 8
    NUM_ACTIONS = 4
    TIME_HORIZON = 1
    HIDDEN = 32
    BATCH = 2

    key = jax.random.PRNGKey(0)
    k_params, k_states, k_actions = jax.random.split(key, 3)

    params = init_params(k_params, NUM_STATES, NUM_OBS, NUM_ACTIONS,
                         TIME_HORIZON, HIDDEN)
    packed = pack_params(params, NUM_STATES, NUM_OBS, NUM_ACTIONS, HIDDEN)

    states = jax.random.normal(k_states, (BATCH, NUM_STATES), jnp.float32)
    actions = jax.random.randint(k_actions, (BATCH,), 0, NUM_ACTIONS)

    out = forward(packed, states, actions, num_states=NUM_STATES,
                  num_observations=NUM_OBS, num_actions=NUM_ACTIONS, hidden_dim=HIDDEN)
    out = jax.tree_util.tree_map(jax.block_until_ready, out)

    # --- reference checks ---
    ref_obs = _ref_mlp3(states,
                        params["obs_w1"], params["obs_b1"],
                        params["obs_w2"], params["obs_b2"],
                        params["obs_w3"], params["obs_b3"])
    a_onehot = jax.nn.one_hot(actions, NUM_ACTIONS, dtype=jnp.float32)
    sa = jnp.concatenate([states, a_onehot], axis=-1)
    ref_next = _ref_mlp3(sa,
                         params["trans_w1"], params["trans_b1"],
                         params["trans_w2"], params["trans_b2"],
                         params["trans_w3"], params["trans_b3"])

    assert out["obs_mean"].shape == (BATCH, NUM_OBS)
    assert out["next_mean"].shape == (BATCH, NUM_STATES)
    assert out["obs_var"].shape == (NUM_OBS,)
    assert out["next_var"].shape == (NUM_STATES,)
    assert jnp.allclose(out["obs_mean"], ref_obs, atol=1e-5, rtol=1e-5)
    assert jnp.allclose(out["next_mean"], ref_next, atol=1e-5, rtol=1e-5)
    assert jnp.allclose(out["obs_var"], jnp.exp(params["obs_log_var"]), atol=1e-6)
    assert jnp.allclose(out["next_var"], jnp.exp(params["trans_log_var"]), atol=1e-6)

    # actions=None path with 1D states (obs-only kernel + squeeze semantics)
    out_1d = forward(packed, states[0], None, num_states=NUM_STATES,
                     num_observations=NUM_OBS, num_actions=NUM_ACTIONS, hidden_dim=HIDDEN)
    out_1d = jax.tree_util.tree_map(jax.block_until_ready, out_1d)
    assert out_1d["obs_mean"].shape == (NUM_OBS,)
    assert jnp.allclose(out_1d["obs_mean"], ref_obs[0], atol=1e-5, rtol=1e-5)

    print("KERNEL_OK")
</pallas_src>

<mosaic_0001>
module attributes {stable_mosaic.version = 11 : i64} {
  func.func @_fused_kernel(%arg0: i32, %arg1: memref<8x8xf32, #tpu.memory_space<vmem>>, %arg2: memref<8x1xi32, #tpu.memory_space<vmem>>, %arg3: memref<8x32xf32, #tpu.memory_space<vmem>>, %arg4: memref<32x32xf32, #tpu.memory_space<vmem>>, %arg5: memref<32x8xf32, #tpu.memory_space<vmem>>, %arg6: memref<8x32xf32, #tpu.memory_space<vmem>>, %arg7: memref<4x32xf32, #tpu.memory_space<vmem>>, %arg8: memref<32x32xf32, #tpu.memory_space<vmem>>, %arg9: memref<32x8xf32, #tpu.memory_space<vmem>>, %arg10: memref<8x32xf32, #tpu.memory_space<vmem>>, %arg11: memref<8x8xf32, #tpu.memory_space<vmem>>, %arg12: memref<8x8xf32, #tpu.memory_space<vmem>>, %arg13: memref<8x16xf32, #tpu.memory_space<vmem>>) attributes {dimension_semantics = [#tpu.dimension_semantics<parallel>], iteration_bounds = array<i64: 1>, scalar_prefetch = 0 : i64, scratch_operands = 0 : i64, tpu.core_type = #tpu.core_type<tc>, window_params = [{transform_indices = @transform_0, window_bounds = array<i64: 8, 8>}, {transform_indices = @transform_1, window_bounds = array<i64: 8, 1>}, {pipeline_mode = #tpu.pipeline_mode<synchronous>, transform_indices = @transform_2, window_bounds = array<i64: 8, 32>}, {pipeline_mode = #tpu.pipeline_mode<synchronous>, transform_indices = @transform_3, window_bounds = array<i64: 32, 32>}, {pipeline_mode = #tpu.pipeline_mode<synchronous>, transform_indices = @transform_4, window_bounds = array<i64: 32, 8>}, {pipeline_mode = #tpu.pipeline_mode<synchronous>, transform_indices = @transform_5, window_bounds = array<i64: 8, 32>}, {pipeline_mode = #tpu.pipeline_mode<synchronous>, transform_indices = @transform_6, window_bounds = array<i64: 4, 32>}, {pipeline_mode = #tpu.pipeline_mode<synchronous>, transform_indices = @transform_7, window_bounds = array<i64: 32, 32>}, {pipeline_mode = #tpu.pipeline_mode<synchronous>, transform_indices = @transform_8, window_bounds = array<i64: 32, 8>}, {pipeline_mode = #tpu.pipeline_mode<synchronous>, transform_indices = @transform_9, window_bounds = array<i64: 8, 32>}, {transform_indices = @transform_10, window_bounds = array<i64: 8, 8>}, {transform_indices = @transform_11, window_bounds = array<i64: 8, 8>}, {transform_indices = @transform_12, window_bounds = array<i64: 8, 16>}]} {
    %c0 = arith.constant 0 : index
    %c0_0 = arith.constant 0 : index
    %0 = vector.load %arg1[%c0, %c0_0] : memref<8x8xf32, #tpu.memory_space<vmem>>, vector<8x8xf32>
    %c0_1 = arith.constant 0 : index
    %c0_2 = arith.constant 0 : index
    %1 = vector.load %arg10[%c0_1, %c0_2] : memref<8x32xf32, #tpu.memory_space<vmem>>, vector<8x32xf32>
    %2 = vector.extract_strided_slice %1 {offsets = [0, 0], sizes = [1, 32], strides = [1, 1]} : vector<8x32xf32> to vector<1x32xf32>
    %3 = vector.extract_strided_slice %1 {offsets = [1, 0], sizes = [1, 32], strides = [1, 1]} : vector<8x32xf32> to vector<1x32xf32>
    %4 = vector.extract_strided_slice %1 {offsets = [2, 0], sizes = [1, 8], strides = [1, 1]} : vector<8x32xf32> to vector<1x8xf32>
    %5 = vector.extract_strided_slice %1 {offsets = [3, 0], sizes = [1, 16], strides = [1, 1]} : vector<8x32xf32> to vector<1x16xf32>
    %6 = vector.extract_strided_slice %1 {offsets = [4, 0], sizes = [1, 32], strides = [1, 1]} : vector<8x32xf32> to vector<1x32xf32>
    %7 = vector.extract_strided_slice %1 {offsets = [5, 0], sizes = [1, 32], strides = [1, 1]} : vector<8x32xf32> to vector<1x32xf32>
    %8 = vector.extract_strided_slice %1 {offsets = [6, 0], sizes = [1, 8], strides = [1, 1]} : vector<8x32xf32> to vector<1x8xf32>
    %c0_3 = arith.constant 0 : index
    %c0_4 = arith.constant 0 : index
    %9 = vector.load %arg3[%c0_3, %c0_4] : memref<8x32xf32, #tpu.memory_space<vmem>>, vector<8x32xf32>
    %cst = arith.constant dense<0.000000e+00> : vector<8x32xf32>
    %10 = tpu.matmul %0, %9, %cst {dimension_numbers = #tpu.dot_dimension_numbers<[1], [0], [0], [1], [0, 0, 1, 1], [], []>} : vector<8x8xf32>, vector<8x32xf32>, vector<8x32xf32> -> vector<8x32xf32>
    %11 = vector.broadcast %2 : vector<1x32xf32> to vector<8x32xf32>
    %12 = arith.addf %10, %11 : vector<8x32xf32>
    %cst_5 = arith.constant 0.000000e+00 : f32
    %13 = vector.broadcast %cst_5 : f32 to vector<8x32xf32>
    %14 = arith.maximumf %12, %13 : vector<8x32xf32>
    %c0_6 = arith.constant 0 : index
    %c0_7 = arith.constant 0 : index
    %15 = vector.load %arg4[%c0_6, %c0_7] : memref<32x32xf32, #tpu.memory_space<vmem>>, vector<32x32xf32>
    %cst_8 = arith.constant dense<0.000000e+00> : vector<8x32xf32>
    %16 = tpu.matmul %14, %15, %cst_8 {dimension_numbers = #tpu.dot_dimension_numbers<[1], [0], [0], [1], [0, 0, 1, 1], [], []>} : vector<8x32xf32>, vector<32x32xf32>, vector<8x32xf32> -> vector<8x32xf32>
    %17 = vector.broadcast %3 : vector<1x32xf32> to vector<8x32xf32>
    %18 = arith.addf %16, %17 : vector<8x32xf32>
    %cst_9 = arith.constant 0.000000e+00 : f32
    %19 = vector.broadcast %cst_9 : f32 to vector<8x32xf32>
    %20 = arith.maximumf %18, %19 : vector<8x32xf32>
    %c0_10 = arith.constant 0 : index
    %c0_11 = arith.constant 0 : index
    %21 = vector.load %arg5[%c0_10, %c0_11] : memref<32x8xf32, #tpu.memory_space<vmem>>, vector<32x8xf32>
    %cst_12 = arith.constant dense<0.000000e+00> : vector<8x8xf32>
    %22 = tpu.matmul %20, %21, %cst_12 {dimension_numbers = #tpu.dot_dimension_numbers<[1], [0], [0], [1], [0, 0, 1, 1], [], []>} : vector<8x32xf32>, vector<32x8xf32>, vector<8x8xf32> -> vector<8x8xf32>
    %23 = vector.broadcast %4 : vector<1x8xf32> to vector<8x8xf32>
    %24 = arith.addf %22, %23 : vector<8x8xf32>
    %c0_13 = arith.constant 0 : index
    %c0_14 = arith.constant 0 : index
    %25 = vector.load %arg2[%c0_13, %c0_14] : memref<8x1xi32, #tpu.memory_space<vmem>>, vector<8x1xi32>
    %26 = tpu.iota {dimensions = array<i32: 1>} : vector<8x4xi32>
    %27 = vector.broadcast %25 : vector<8x1xi32> to vector<8x4xi32>
    %28 = arith.cmpi eq, %26, %27 : vector<8x4xi32>
    %29 = arith.extui %28 : vector<8x4xi1> to vector<8x4xi32>
    %30 = arith.sitofp %29 : vector<8x4xi32> to vector<8x4xf32>
    %c0_15 = arith.constant 0 : index
    %c0_16 = arith.constant 0 : index
    %31 = vector.load %arg6[%c0_15, %c0_16] : memref<8x32xf32, #tpu.memory_space<vmem>>, vector<8x32xf32>
    %cst_17 = arith.constant dense<0.000000e+00> : vector<8x32xf32>
    %32 = tpu.matmul %0, %31, %cst_17 {dimension_numbers = #tpu.dot_dimension_numbers<[1], [0], [0], [1], [0, 0, 1, 1], [], []>} : vector<8x8xf32>, vector<8x32xf32>, vector<8x32xf32> -> vector<8x32xf32>
    %c0_18 = arith.constant 0 : index
    %c0_19 = arith.constant 0 : index
    %33 = vector.load %arg7[%c0_18, %c0_19] : memref<4x32xf32, #tpu.memory_space<vmem>>, vector<4x32xf32>
    %cst_20 = arith.constant dense<0.000000e+00> : vector<8x32xf32>
    %34 = tpu.matmul %30, %33, %cst_20 {dimension_numbers = #tpu.dot_dimension_numbers<[1], [0], [0], [1], [0, 0, 1, 1], [], []>} : vector<8x4xf32>, vector<4x32xf32>, vector<8x32xf32> -> vector<8x32xf32>
    %35 = arith.addf %32, %34 : vector<8x32xf32>
    %36 = vector.broadcast %6 : vector<1x32xf32> to vector<8x32xf32>
    %37 = arith.addf %35, %36 : vector<8x32xf32>
    %cst_21 = arith.constant 0.000000e+00 : f32
    %38 = vector.broadcast %cst_21 : f32 to vector<8x32xf32>
    %39 = arith.maximumf %37, %38 : vector<8x32xf32>
    %c0_22 = arith.constant 0 : index
    %c0_23 = arith.constant 0 : index
    %40 = vector.load %arg8[%c0_22, %c0_23] : memref<32x32xf32, #tpu.memory_space<vmem>>, vector<32x32xf32>
    %cst_24 = arith.constant dense<0.000000e+00> : vector<8x32xf32>
    %41 = tpu.matmul %39, %40, %cst_24 {dimension_numbers = #tpu.dot_dimension_numbers<[1], [0], [0], [1], [0, 0, 1, 1], [], []>} : vector<8x32xf32>, vector<32x32xf32>, vector<8x32xf32> -> vector<8x32xf32>
    %42 = vector.broadcast %7 : vector<1x32xf32> to vector<8x32xf32>
    %43 = arith.addf %41, %42 : vector<8x32xf32>
    %cst_25 = arith.constant 0.000000e+00 : f32
    %44 = vector.broadcast %cst_25 : f32 to vector<8x32xf32>
    %45 = arith.maximumf %43, %44 : vector<8x32xf32>
    %c0_26 = arith.constant 0 : index
    %c0_27 = arith.constant 0 : index
    %46 = vector.load %arg9[%c0_26, %c0_27] : memref<32x8xf32, #tpu.memory_space<vmem>>, vector<32x8xf32>
    %cst_28 = arith.constant dense<0.000000e+00> : vector<8x8xf32>
    %47 = tpu.matmul %45, %46, %cst_28 {dimension_numbers = #tpu.dot_dimension_numbers<[1], [0], [0], [1], [0, 0, 1, 1], [], []>} : vector<8x32xf32>, vector<32x8xf32>, vector<8x8xf32> -> vector<8x8xf32>
    %48 = vector.broadcast %8 : vector<1x8xf32> to vector<8x8xf32>
    %49 = arith.addf %47, %48 : vector<8x8xf32>
    %c0_29 = arith.constant 0 : index
    %c0_30 = arith.constant 0 : index
    %50 = vector.load %arg11[%c0_29, %c0_30] : memref<8x8xf32, #tpu.memory_space<vmem>>, vector<8x8xf32>
    tpu.vector_store %arg11[%c0_29, %c0_30], %24 {strides = array<i32>} : memref<8x8xf32, #tpu.memory_space<vmem>>, vector<8x8xf32>,
    %c0_31 = arith.constant 0 : index
    %c0_32 = arith.constant 0 : index
    %51 = vector.load %arg12[%c0_31, %c0_32] : memref<8x8xf32, #tpu.memory_space<vmem>>, vector<8x8xf32>
    tpu.vector_store %arg12[%c0_31, %c0_32], %49 {strides = array<i32>} : memref<8x8xf32, #tpu.memory_space<vmem>>, vector<8x8xf32>,
    %52 = math.exp %5 : vector<1x16xf32>
    %53 = vector.shape_cast %52 : vector<1x16xf32> to vector<1x16xf32>
    %54 = vector.broadcast %53 : vector<1x16xf32> to vector<8x16xf32>
    %c0_33 = arith.constant 0 : index
    %c0_34 = arith.constant 0 : index
    %55 = vector.load %arg13[%c0_33, %c0_34] : memref<8x16xf32, #tpu.memory_space<vmem>>, vector<8x16xf32>
    tpu.vector_store %arg13[%c0_33, %c0_34], %54 {strides = array<i32>} : memref<8x16xf32, #tpu.memory_space<vmem>>, vector<8x16xf32>,
    return
  }
  func.func @transform_0(%arg0: i32) -> (i32, i32) {
    %c0_i32 = arith.constant 0 : i32
    %c0_i32_0 = arith.constant 0 : i32
    return %arg0, %c0_i32 : i32, i32
  }
  func.func @transform_1(%arg0: i32) -> (i32, i32) {
    %c0_i32 = arith.constant 0 : i32
    %c0_i32_0 = arith.constant 0 : i32
    return %arg0, %c0_i32 : i32, i32
  }
  func.func @transform_2(%arg0: i32) -> (i32, i32) {
    %c0_i32 = arith.constant 0 : i32
    %c0_i32_0 = arith.constant 0 : i32
    %c0_i32_1 = arith.constant 0 : i32
    return %c0_i32, %c0_i32_0 : i32, i32
  }
  func.func @transform_3(%arg0: i32) -> (i32, i32) {
    %c0_i32 = arith.constant 0 : i32
    %c0_i32_0 = arith.constant 0 : i32
    %c0_i32_1 = arith.constant 0 : i32
    return %c0_i32, %c0_i32_0 : i32, i32
  }
  func.func @transform_4(%arg0: i32) -> (i32, i32) {
    %c0_i32 = arith.constant 0 : i32
    %c0_i32_0 = arith.constant 0 : i32
    %c0_i32_1 = arith.constant 0 : i32
    return %c0_i32, %c0_i32_0 : i32, i32
  }
  func.func @transform_5(%arg0: i32) -> (i32, i32) {
    %c0_i32 = arith.constant 0 : i32
    %c0_i32_0 = arith.constant 0 : i32
    %c0_i32_1 = arith.constant 0 : i32
    return %c0_i32, %c0_i32_0 : i32, i32
  }
  func.func @transform_6(%arg0: i32) -> (i32, i32) {
    %c0_i32 = arith.constant 0 : i32
    %c0_i32_0 = arith.constant 0 : i32
    %c0_i32_1 = arith.constant 0 : i32
    return %c0_i32, %c0_i32_0 : i32, i32
  }
  func.func @transform_7(%arg0: i32) -> (i32, i32) {
    %c0_i32 = arith.constant 0 : i32
    %c0_i32_0 = arith.constant 0 : i32
    %c0_i32_1 = arith.constant 0 : i32
    return %c0_i32, %c0_i32_0 : i32, i32
  }
  func.func @transform_8(%arg0: i32) -> (i32, i32) {
    %c0_i32 = arith.constant 0 : i32
    %c0_i32_0 = arith.constant 0 : i32
    %c0_i32_1 = arith.constant 0 : i32
    return %c0_i32, %c0_i32_0 : i32, i32
  }
  func.func @transform_9(%arg0: i32) -> (i32, i32) {
    %c0_i32 = arith.constant 0 : i32
    %c0_i32_0 = arith.constant 0 : i32
    %c0_i32_1 = arith.constant 0 : i32
    return %c0_i32, %c0_i32_0 : i32, i32
  }
  func.func @transform_10(%arg0: i32) -> (i32, i32) {
    %c0_i32 = arith.constant 0 : i32
    %c0_i32_0 = arith.constant 0 : i32
    return %arg0, %c0_i32 : i32, i32
  }
  func.func @transform_11(%arg0: i32) -> (i32, i32) {
    %c0_i32 = arith.constant 0 : i32
    %c0_i32_0 = arith.constant 0 : i32
    return %arg0, %c0_i32 : i32, i32
  }
  func.func @transform_12(%arg0: i32) -> (i32, i32) {
    %c0_i32 = arith.constant 0 : i32
    %c0_i32_0 = arith.constant 0 : i32
    return %arg0, %c0_i32 : i32, i32
  }
}

</mosaic_0001>

<llo_original>
// kernel: tpu_custom_call.1
$region0: #{tpu_custom_call.1}
  #allocation0 [shape = 'u32[]', space=smem, size = 0x4, offset = 0x4, fixed_abs, tag = 'smem constant byte address 0x4 - core index']
  #allocation1 [shape = 'u32[144,128]{1,0:T(1,128)}', space=vmem, size = 0x12000, scoped, tag = 'internal scratch']
  %s0 = inlined_call_operand.vmem [shape: f32[8,8], index: 0, kind: input, shape index: {}]
  %s1 = inlined_call_operand.vmem [shape: s32[8,1], index: 1, kind: input, shape index: {}]
  %s2 = inlined_call_operand.vmem [shape: f32[8,32], index: 2, kind: input, shape index: {}]
  %s3 = inlined_call_operand.vmem [shape: f32[32,32], index: 3, kind: input, shape index: {}]
  %s4 = inlined_call_operand.vmem [shape: f32[32,8], index: 4, kind: input, shape index: {}]
  %s5 = inlined_call_operand.vmem [shape: f32[8,32], index: 5, kind: input, shape index: {}]
  %s6 = inlined_call_operand.hbm [shape: f32[4,32], index: 6, kind: input, shape index: {}]
  %s7 = inlined_call_operand.vmem [shape: f32[32,32], index: 7, kind: input, shape index: {}]
  %s8 = inlined_call_operand.vmem [shape: f32[32,8], index: 8, kind: input, shape index: {}]
  %s9 = inlined_call_operand.vmem [shape: f32[8,32], index: 9, kind: input, shape index: {}]
  %s10 = inlined_call_operand.hbm [shape: f32[8,8], index: 10, kind: output, shape index: {0}]
  %s11 = inlined_call_operand.hbm [shape: f32[8,8], index: 11, kind: output, shape index: {1}]
  %s12 = inlined_call_operand.hbm [shape: f32[8,16], index: 12, kind: output, shape index: {2}]
  %13 = xla_tuple %s10, %s11, %s12
  %s14 = sld [smem:[#allocation0]]
  $region70: #{tpu_custom_call.1} parent=0
    _
  %s16 = ssub.s32 1, %s14
  %s17 = scalar_select 0, %s16, %s14
  $region1: #{tpu_custom_call.1} parent=0
    #allocation2 [shape = 'u8[2048]{0}', space=vmem, size = 0x800, scoped, tag = 'input window, operand 6, single buffered']
    #allocation3 [shape = 's32[1]{0}', space=sflag, size = 0x4, scoped, tag = 'scoped memory for tpu_custom_call.1']
    #allocation4 [shape = 's32[1]{0}', space=sflag, size = 0x4, scoped, tag = 'scoped memory for tpu_custom_call.1']
    #allocation5 [shape = 'u8[4096]{0}', space=vmem, size = 0x1000, scoped, tag = 'output window, operand 0, single buffered']
    #allocation6 [shape = 'u8[4096]{0}', space=vmem, size = 0x1000, scoped, tag = 'output window, operand 1, single buffered']
    #allocation7 [shape = 's32[1]{0}', space=sflag, size = 0x4, scoped, tag = 'scoped memory for tpu_custom_call.1']
    #allocation8 [shape = 'u8[4096]{0}', space=vmem, size = 0x1000, scoped, tag = 'output window, operand 2, single buffered']
    %18 = vsyncpa [#allocation3], 0
    %19 = vsyncpa [#allocation4], 0
    %20 = vsyncpa [#allocation7], 0
    // Predicated region
    $region2: #{tpu_custom_call.1} parent=1 // pred_check
      _
    $region3: #{tpu_custom_call.1} parent=1 // pred_check_branch
      %22 = sbr.rel (0) target = $region5
    $region4: #{tpu_custom_call.1} parent=1 // pred_region
      _
    $region5: #{tpu_custom_call.1} parent=1 // pred_fallthru
      _
    // Predicated region
    $region6: #{tpu_custom_call.1} parent=1 // pred_check
      _
    $region7: #{tpu_custom_call.1} parent=1 // pred_check_branch
      %24 = sbr.rel (0) target = $region9
    $region8: #{tpu_custom_call.1} parent=1 // pred_region
      _
    $region9: #{tpu_custom_call.1} parent=1 // pred_fallthru
      _
    // Predicated region
    $region10: #{tpu_custom_call.1} parent=1 // pred_check
      _
    $region11: #{tpu_custom_call.1} parent=1 // pred_check_branch
      %26 = sbr.rel (0) target = $region13
    $region12: #{tpu_custom_call.1} parent=1 // pred_region
      _
    $region13: #{tpu_custom_call.1} parent=1 // pred_fallthru
      _
    // Predicated region
    $region14: #{tpu_custom_call.1} parent=1 // pred_check
      _
    $region15: #{tpu_custom_call.1} parent=1 // pred_check_branch
      %28 = sbr.rel (0) target = $region17
    $region16: #{tpu_custom_call.1} parent=1 // pred_region
      _
    $region17: #{tpu_custom_call.1} parent=1 // pred_fallthru
      _
    // Predicated region
    $region18: #{tpu_custom_call.1} parent=1 // pred_check
      _
    $region19: #{tpu_custom_call.1} parent=1 // pred_check_branch
      %30 = sbr.rel (0) target = $region21
    $region20: #{tpu_custom_call.1} parent=1 // pred_region
      _
    $region21: #{tpu_custom_call.1} parent=1 // pred_fallthru
      _
    // Predicated region
    $region22: #{tpu_custom_call.1} parent=1 // pred_check
      _
    $region23: #{tpu_custom_call.1} parent=1 // pred_check_branch
      %32 = sbr.rel (0) target = $region25
    $region24: #{tpu_custom_call.1} parent=1 // pred_region
      _
    $region25: #{tpu_custom_call.1} parent=1 // pred_fallthru
      _
    // Predicated region
    $region26: #{tpu_custom_call.1} parent=1 // pred_check
      _
    $region27: #{tpu_custom_call.1} parent=1 // pred_check_branch
      %34 = sbr.rel (0) target = $region29
    $region28: #{tpu_custom_call.1} parent=1 // pred_region
      %s36 = ssub.s32 64, 64
      %37 = vsyncadd [#allocation3], %s36
      %s39 = sshll.u32 [#allocation2], 4
      %s40 = int_to_ptr.vmem [resolvable:$true] %s39
      %42 = dma.hbm_to_vmem [thread:$0]  %s6, 64, %s40, [#allocation3]
    $region29: #{tpu_custom_call.1} parent=1 // pred_fallthru
      _
    // Predicated region
    $region30: #{tpu_custom_call.1} parent=1 // pred_check
      _
    $region31: #{tpu_custom_call.1} parent=1 // pred_check_branch
      %44 = sbr.rel (0) target = $region33
    $region32: #{tpu_custom_call.1} parent=1 // pred_region
      _
    $region33: #{tpu_custom_call.1} parent=1 // pred_fallthru
      _
    // Predicated region
    $region34: #{tpu_custom_call.1} parent=1 // pred_check
      _
    $region35: #{tpu_custom_call.1} parent=1 // pred_check_branch
      %46 = sbr.rel (0) target = $region37
    $region36: #{tpu_custom_call.1} parent=1 // pred_region
      _
    $region37: #{tpu_custom_call.1} parent=1 // pred_fallthru
      _
    // Predicated region
    $region38: #{tpu_custom_call.1} parent=1 // pred_check
      _
    $region39: #{tpu_custom_call.1} parent=1 // pred_check_branch
      %48 = sbr.rel (0) target = $region41
    $region40: #{tpu_custom_call.1} parent=1 // pred_region
      _
    $region41: #{tpu_custom_call.1} parent=1 // pred_fallthru
      _
    // Predicated region
    $region42: #{tpu_custom_call.1} parent=1 // pred_check
      _
    $region43: #{tpu_custom_call.1} parent=1 // pred_check_branch
      %50 = sbr.rel (0) target = $region45
    $region44: #{tpu_custom_call.1} parent=1 // pred_region
      %51 = dma.done [#allocation3], 64
    $region45: #{tpu_custom_call.1} parent=1 // pred_fallthru
      _
    %v52 = vld [vmem:[%s0] sm:$0xff]
    %v53 = vld [vmem:[%s9] sm:$0xff]
    %v54 = vld [vmem:[%s2] sm:$0xff]
    %v55 = vlaneseq
    %v56 = vshrl.u32 %v55, 7
    %v57 = vsub.s32 0, %v56
    %v58 = vrot.slane %v53, %v57
    %vm59 = vcmask 64512
    %v61 = vsel %vm59, %v52, 0
    %63 = vmatprep.subr.mxu0 0.0
    %64 = vmatpush1.msra.mxu0 %v54
    %65 = vmatprep.subr.mxu0 0.0
    %66 = vmatpush1.msra.mxu0 0.0
    %67 = vmatprep.subr.mxu0 0.0
    %68 = vmatpush1.msra.mxu0 0.0
    %69 = vmatprep.subr.mxu0 0.0
    %70 = vmatpush1.msra.mxu0 0.0
    %71 = vmatprep.subr.mxu0 0.0
    %72 = vmatpush1.msra.mxu0 0.0
    %73 = vmatprep.subr.mxu0 0.0
    %74 = vmatpush1.msra.mxu0 0.0
    %75 = vmatprep.subr.mxu0 0.0
    %76 = vmatpush1.msra.mxu0 0.0
    %77 = vmatprep.subr.mxu0 0.0
    %78 = vmatpush1.msra.mxu0 0.0
    %79 = vmatprep.subr.mxu0 0.0
    %80 = vmatpush1.msra.mxu0 0.0
    %81 = vmatprep.subr.mxu0 0.0
    %82 = vmatpush1.msra.mxu0 0.0
    %83 = vmatprep.subr.mxu0 0.0
    %84 = vmatpush1.msra.mxu0 0.0
    %85 = vmatprep.subr.mxu0 0.0
    %86 = vmatpush1.msra.mxu0 0.0
    %87 = vmatprep.subr.mxu0 0.0
    %88 = vmatpush1.msra.mxu0 0.0
    %89 = vmatprep.subr.mxu0 0.0
    %90 = vmatpush1.msra.mxu0 0.0
    %91 = vmatprep.subr.mxu0 0.0
    %92 = vmatpush1.msra.mxu0 0.0
    %93 = vmatprep.subr.mxu0 0.0
    %94 = vmatpush1.msra.mxu0 0.0
    %95 = vmatprep.subr.mxu0 0.0
    %96 = vmatpush1.msra.mxu0 0.0
    %97 = vmatprep.subr.mxu0 0.0
    %98 = vmatpush1.msra.mxu0 0.0
    %99 = vmatprep.subr.mxu0 0.0
    %100 = vmatpush1.msra.mxu0 0.0
    %101 = vmatprep.subr.mxu0 0.0
    %102 = vmatpush1.msra.mxu0 0.0
    %103 = vmatprep.subr.mxu0 0.0
    %104 = vmatpush1.msra.mxu0 0.0
    %105 = vmatprep.subr.mxu0 0.0
    %106 = vmatpush1.msra.mxu0 0.0
    %107 = vmatprep.subr.mxu0 0.0
    %108 = vmatpush1.msra.mxu0 0.0
    %109 = vmatprep.subr.mxu0 0.0
    %110 = vmatpush1.msra.mxu0 0.0
    %111 = vmatprep.subr.mxu0 0.0
    %112 = vmatpush1.msra.mxu0 0.0
    %113 = vmatprep.subr.mxu0 0.0
    %114 = vmatpush1.msra.mxu0 0.0
    %115 = vmatprep.subr.mxu0 0.0
    %116 = vmatpush1.msra.mxu0 0.0
    %117 = vmatprep.subr.mxu0 0.0
    %118 = vmatpush1.msra.mxu0 0.0
    %119 = vmatprep.subr.mxu0 0.0
    %120 = vmatpush1.msra.mxu0 0.0
    %121 = vmatprep.subr.mxu0 0.0
    %122 = vmatpush1.msra.mxu0 0.0
    %123 = vmatprep.subr.mxu0 0.0
    %124 = vmatpush1.msra.mxu0 0.0
    %125 = vmatprep.subr.mxu0 0.0
    %126 = vmatpush1.msra.mxu0 0.0
    %127 = vmatprep.mubr.f32.mxu0 0.0
    %128 = vmatmul.mubr.f32.gmra.mrb[0].mxu0 %v61
    %v129 = vpop.f32.mrb[0].mxu0
    %v130 = vadd.f32 %v58, %v129
    %v131 = vpop.f32.mrb[0].mxu0
    %132 = vdwg.mxu0
    %v133 = vmax.f32 %v130, 0.0
    %v134 = vld [vmem:[%s3] sm:$0xff]
    %v135 = vld [vmem:[%s3 + $0x8] sm:$0xff]
    %v136 = vld [vmem:[%s3 + $0x10] sm:$0xff]
    %v137 = vld [vmem:[%s3 + $0x18] sm:$0xff]
    %v138 = vlaneseq
    %v139 = vshrl.u32 %v138, 7
    %v140 = vsub.s32 1, %v139
    %v141 = vrot.slane %v53, %v140
    %vm142 = vcmask 261120
    %v144 = vsel %vm142, %v133, 0
    %146 = vmatprep.subr.mxu0 0.0
    %147 = vmatpush1.msra.mxu0 %v134
    %148 = vmatprep.subr.mxu0 0.0
    %149 = vmatpush1.msra.mxu0 %v135
    %150 = vmatprep.subr.mxu0 0.0
    %151 = vmatpush1.msra.mxu0 %v136
    %152 = vmatprep.subr.mxu0 0.0
    %153 = vmatpush1.msra.mxu0 %v137
    %154 = vmatprep.subr.mxu0 0.0
    %155 = vmatpush1.msra.mxu0 0.0
    %156 = vmatprep.subr.mxu0 0.0
    %157 = vmatpush1.msra.mxu0 0.0
    %158 = vmatprep.subr.mxu0 0.0
    %159 = vmatpush1.msra.mxu0 0.0
    %160 = vmatprep.subr.mxu0 0.0
    %161 = vmatpush1.msra.mxu0 0.0
    %162 = vmatprep.subr.mxu0 0.0
    %163 = vmatpush1.msra.mxu0 0.0
    %164 = vmatprep.subr.mxu0 0.0
    %165 = vmatpush1.msra.mxu0 0.0
    %166 = vmatprep.subr.mxu0 0.0
    %167 = vmatpush1.msra.mxu0 0.0
    %168 = vmatprep.subr.mxu0 0.0
    %169 = vmatpush1.msra.mxu0 0.0
    %170 = vmatprep.subr.mxu0 0.0
    %171 = vmatpush1.msra.mxu0 0.0
    %172 = vmatprep.subr.mxu0 0.0
    %173 = vmatpush1.msra.mxu0 0.0
    %174 = vmatprep.subr.mxu0 0.0
    %175 = vmatpush1.msra.mxu0 0.0
    %176 = vmatprep.subr.mxu0 0.0
    %177 = vmatpush1.msra.mxu0 0.0
    %178 = vmatprep.subr.mxu0 0.0
    %179 = vmatpush1.msra.mxu0 0.0
    %180 = vmatprep.subr.mxu0 0.0
    %181 = vmatpush1.msra.mxu0 0.0
    %182 = vmatprep.subr.mxu0 0.0
    %183 = vmatpush1.msra.mxu0 0.0
    %184 = vmatprep.subr.mxu0 0.0
    %185 = vmatpush1.msra.mxu0 0.0
    %186 = vmatprep.subr.mxu0 0.0
    %187 = vmatpush1.msra.mxu0 0.0
    %188 = vmatprep.subr.mxu0 0.0
    %189 = vmatpush1.msra.mxu0 0.0
    %190 = vmatprep.subr.mxu0 0.0
    %191 = vmatpush1.msra.mxu0 0.0
    %192 = vmatprep.subr.mxu0 0.0
    %193 = vmatpush1.msra.mxu0 0.0
    %194 = vmatprep.subr.mxu0 0.0
    %195 = vmatpush1.msra.mxu0 0.0
    %196 = vmatprep.subr.mxu0 0.0
    %197 = vmatpush1.msra.mxu0 0.0
    %198 = vmatprep.subr.mxu0 0.0
    %199 = vmatpush1.msra.mxu0 0.0
    %200 = vmatprep.subr.mxu0 0.0
    %201 = vmatpush1.msra.mxu0 0.0
    %202 = vmatprep.subr.mxu0 0.0
    %203 = vmatpush1.msra.mxu0 0.0
    %204 = vmatprep.subr.mxu0 0.0
    %205 = vmatpush1.msra.mxu0 0.0
    %206 = vmatprep.subr.mxu0 0.0
    %207 = vmatpush1.msra.mxu0 0.0
    %208 = vmatprep.subr.mxu0 0.0
    %209 = vmatpush1.msra.mxu0 0.0
    %210 = vmatprep.mubr.f32.mxu0 0.0
    %211 = vmatmul.mubr.f32.gmra.mrb[0].mxu0 %v144
    %v212 = vpop.f32.mrb[0].mxu0
    %v213 = vadd.f32 %v141, %v212
    %v214 = vpop.f32.mrb[0].mxu0
    %215 = vdwg.mxu0
    %v216 = vmax.f32 %v213, 0.0
    %v217 = vld [vmem:[%s4] sm:$0xff]
    %v218 = vld [vmem:[%s4 + $0x8] sm:$0xff]
    %v219 = vld [vmem:[%s4 + $0x10] sm:$0xff]
    %v220 = vld [vmem:[%s4 + $0x18] sm:$0xff]
    %v221 = vlaneseq
    %v222 = vshrl.u32 %v221, 7
    %v223 = vsub.s32 2, %v222
    %v224 = vrot.slane %v53, %v223
    %v226 = vsel %vm142, %v216, 0
    %228 = vmatprep.subr.mxu0 0.0
    %229 = vmatpush1.msra.mxu0 %v217
    %230 = vmatprep.subr.mxu0 0.0
    %231 = vmatpush1.msra.mxu0 %v218
    %232 = vmatprep.subr.mxu0 0.0
    %233 = vmatpush1.msra.mxu0 %v219
    %234 = vmatprep.subr.mxu0 0.0
    %235 = vmatpush1.msra.mxu0 %v220
    %236 = vmatprep.subr.mxu0 0.0
    %237 = vmatpush1.msra.mxu0 0.0
    %238 = vmatprep.subr.mxu0 0.0
    %239 = vmatpush1.msra.mxu0 0.0
    %240 = vmatprep.subr.mxu0 0.0
    %241 = vmatpush1.msra.mxu0 0.0
    %242 = vmatprep.subr.mxu0 0.0
    %243 = vmatpush1.msra.mxu0 0.0
    %244 = vmatprep.subr.mxu0 0.0
    %245 = vmatpush1.msra.mxu0 0.0
    %246 = vmatprep.subr.mxu0 0.0
    %247 = vmatpush1.msra.mxu0 0.0
    %248 = vmatprep.subr.mxu0 0.0
    %249 = vmatpush1.msra.mxu0 0.0
    %250 = vmatprep.subr.mxu0 0.0
    %251 = vmatpush1.msra.mxu0 0.0
    %252 = vmatprep.subr.mxu0 0.0
    %253 = vmatpush1.msra.mxu0 0.0
    %254 = vmatprep.subr.mxu0 0.0
    %255 = vmatpush1.msra.mxu0 0.0
    %256 = vmatprep.subr.mxu0 0.0
    %257 = vmatpush1.msra.mxu0 0.0
    %258 = vmatprep.subr.mxu0 0.0
    %259 = vmatpush1.msra.mxu0 0.0
    %260 = vmatprep.subr.mxu0 0.0
    %261 = vmatpush1.msra.mxu0 0.0
    %262 = vmatprep.subr.mxu0 0.0
    %263 = vmatpush1.msra.mxu0 0.0
    %264 = vmatprep.subr.mxu0 0.0
    %265 = vmatpush1.msra.mxu0 0.0
    %266 = vmatprep.subr.mxu0 0.0
    %267 = vmatpush1.msra.mxu0 0.0
    %268 = vmatprep.subr.mxu0 0.0
    %269 = vmatpush1.msra.mxu0 0.0
    %270 = vmatprep.subr.mxu0 0.0
    %271 = vmatpush1.msra.mxu0 0.0
    %272 = vmatprep.subr.mxu0 0.0
    %273 = vmatpush1.msra.mxu0 0.0
    %274 = vmatprep.subr.mxu0 0.0
    %275 = vmatpush1.msra.mxu0 0.0
    %276 = vmatprep.subr.mxu0 0.0
    %277 = vmatpush1.msra.mxu0 0.0
    %278 = vmatprep.subr.mxu0 0.0
    %279 = vmatpush1.msra.mxu0 0.0
    %280 = vmatprep.subr.mxu0 0.0
    %281 = vmatpush1.msra.mxu0 0.0
    %282 = vmatprep.subr.mxu0 0.0
    %283 = vmatpush1.msra.mxu0 0.0
    %284 = vmatprep.subr.mxu0 0.0
    %285 = vmatpush1.msra.mxu0 0.0
    %286 = vmatprep.subr.mxu0 0.0
    %287 = vmatpush1.msra.mxu0 0.0
    %288 = vmatprep.subr.mxu0 0.0
    %289 = vmatpush1.msra.mxu0 0.0
    %290 = vmatprep.subr.mxu0 0.0
    %291 = vmatpush1.msra.mxu0 0.0
    %292 = vmatprep.mubr.f32.mxu0 0.0
    %293 = vmatmul.mubr.f32.gmra.mrb[0].mxu0 %v226
    %v294 = vpop.f32.mrb[0].mxu0
    %v295 = vadd.f32 %v224, %v294
    %v296 = vpop.f32.mrb[0].mxu0
    %297 = vdwg.mxu0
    %v298 = vld [vmem:[%s1] sm:$0xff]
    %v299 = vlaneseq
    %v300 = vand.u32 %v299, 127
    %301 = vset.pattern.permute.xlu0 0
    %302 = vperm.xlu0 %301, %v298
    %v303 = vpop.permute.xlu0 %302
    %vm304 = vcmp.eq.s32.totalorder %v300, %v303
    %v305 = vsel %vm304, 1, 0
    %v306 = vcvt.s32.f32 %v305
    %v307 = vld [vmem:[%s5] sm:$0xff]
    %v308 = vld [vmem:[#allocation2] sm:$0xf]
    %vm309 = vcmask 31744
    %v311 = vsel %vm309, %v306, 0
    %vm313 = vcmask 1043456
    %v315 = vsel %vm313, %v308, 0
    %317 = vmatprep.subr.mxu0 0.0
    %318 = vmatpush1.msra.mxu0 %v315
    %319 = vmatprep.subr.mxu0 0.0
    %320 = vmatpush1.msra.mxu0 0.0
    %321 = vmatprep.subr.mxu0 0.0
    %322 = vmatpush1.msra.mxu0 0.0
    %323 = vmatprep.subr.mxu0 0.0
    %324 = vmatpush1.msra.mxu0 0.0
    %325 = vmatprep.subr.mxu0 0.0
    %326 = vmatpush1.msra.mxu0 0.0
    %327 = vmatprep.subr.mxu0 0.0
    %328 = vmatpush1.msra.mxu0 0.0
    %329 = vmatprep.subr.mxu0 0.0
    %330 = vmatpush1.msra.mxu0 0.0
    %331 = vmatprep.subr.mxu0 0.0
    %332 = vmatpush1.msra.mxu0 0.0
    %333 = vmatprep.subr.mxu0 0.0
    %334 = vmatpush1.msra.mxu0 0.0
    %335 = vmatprep.subr.mxu0 0.0
    %336 = vmatpush1.msra.mxu0 0.0
    %337 = vmatprep.subr.mxu0 0.0
    %338 = vmatpush1.msra.mxu0 0.0
    %339 = vmatprep.subr.mxu0 0.0
    %340 = vmatpush1.msra.mxu0 0.0
    %341 = vmatprep.subr.mxu0 0.0
    %342 = vmatpush1.msra.mxu0 0.0
    %343 = vmatprep.subr.mxu0 0.0
    %344 = vmatpush1.msra.mxu0 0.0
    %345 = vmatprep.subr.mxu0 0.0
    %346 = vmatpush1.msra.mxu0 0.0
    %347 = vmatprep.subr.mxu0 0.0
    %348 = vmatpush1.msra.mxu0 0.0
    %349 = vmatprep.subr.mxu0 0.0
    %350 = vmatpush1.msra.mxu0 0.0
    %351 = vmatprep.subr.mxu0 0.0
    %352 = vmatpush1.msra.mxu0 0.0
    %353 = vmatprep.subr.mxu0 0.0
    %354 = vmatpush1.msra.mxu0 0.0
    %355 = vmatprep.subr.mxu0 0.0
    %356 = vmatpush1.msra.mxu0 0.0
    %357 = vmatprep.subr.mxu0 0.0
    %358 = vmatpush1.msra.mxu0 0.0
    %359 = vmatprep.subr.mxu0 0.0
    %360 = vmatpush1.msra.mxu0 0.0
    %361 = vmatprep.subr.mxu0 0.0
    %362 = vmatpush1.msra.mxu0 0.0
    %363 = vmatprep.subr.mxu0 0.0
    %364 = vmatpush1.msra.mxu0 0.0
    %365 = vmatprep.subr.mxu0 0.0
    %366 = vmatpush1.msra.mxu0 0.0
    %367 = vmatprep.subr.mxu0 0.0
    %368 = vmatpush1.msra.mxu0 0.0
    %369 = vmatprep.subr.mxu0 0.0
    %370 = vmatpush1.msra.mxu0 0.0
    %371 = vmatprep.subr.mxu0 0.0
    %372 = vmatpush1.msra.mxu0 0.0
    %373 = vmatprep.subr.mxu0 0.0
    %374 = vmatpush1.msra.mxu0 0.0
    %375 = vmatprep.subr.mxu0 0.0
    %376 = vmatpush1.msra.mxu0 0.0
    %377 = vmatprep.subr.mxu0 0.0
    %378 = vmatpush1.msra.mxu0 0.0
    %379 = vmatprep.subr.mxu0 0.0
    %380 = vmatpush1.msra.mxu0 0.0
    %381 = vmatprep.mubr.f32.mxu0 0.0
    %382 = vmatmul.mubr.f32.gmra.mrb[0].mxu0 %v311
    %v383 = vpop.f32.mrb[0].mxu0
    %v384 = vadd.f32 0.0, %v383
    %v385 = vpop.f32.mrb[0].mxu0
    %386 = vdwg.mxu0
    %387 = vmatprep.subr.mxu0 0.0
    %388 = vmatpush1.msra.mxu0 %v307
    %389 = vmatprep.subr.mxu0 0.0
    %390 = vmatpush1.msra.mxu0 0.0
    %391 = vmatprep.subr.mxu0 0.0
    %392 = vmatpush1.msra.mxu0 0.0
    %393 = vmatprep.subr.mxu0 0.0
    %394 = vmatpush1.msra.mxu0 0.0
    %395 = vmatprep.subr.mxu0 0.0
    %396 = vmatpush1.msra.mxu0 0.0
    %397 = vmatprep.subr.mxu0 0.0
    %398 = vmatpush1.msra.mxu0 0.0
    %399 = vmatprep.subr.mxu0 0.0
    %400 = vmatpush1.msra.mxu0 0.0
    %401 = vmatprep.subr.mxu0 0.0
    %402 = vmatpush1.msra.mxu0 0.0
    %403 = vmatprep.subr.mxu0 0.0
    %404 = vmatpush1.msra.mxu0 0.0
    %405 = vmatprep.subr.mxu0 0.0
    %406 = vmatpush1.msra.mxu0 0.0
    %407 = vmatprep.subr.mxu0 0.0
    %408 = vmatpush1.msra.mxu0 0.0
    %409 = vmatprep.subr.mxu0 0.0
    %410 = vmatpush1.msra.mxu0 0.0
    %411 = vmatprep.subr.mxu0 0.0
    %412 = vmatpush1.msra.mxu0 0.0
    %413 = vmatprep.subr.mxu0 0.0
    %414 = vmatpush1.msra.mxu0 0.0
    %415 = vmatprep.subr.mxu0 0.0
    %416 = vmatpush1.msra.mxu0 0.0
    %417 = vmatprep.subr.mxu0 0.0
    %418 = vmatpush1.msra.mxu0 0.0
    %419 = vmatprep.subr.mxu0 0.0
    %420 = vmatpush1.msra.mxu0 0.0
    %421 = vmatprep.subr.mxu0 0.0
    %422 = vmatpush1.msra.mxu0 0.0
    %423 = vmatprep.subr.mxu0 0.0
    %424 = vmatpush1.msra.mxu0 0.0
    %425 = vmatprep.subr.mxu0 0.0
    %426 = vmatpush1.msra.mxu0 0.0
    %427 = vmatprep.subr.mxu0 0.0
    %428 = vmatpush1.msra.mxu0 0.0
    %429 = vmatprep.subr.mxu0 0.0
    %430 = vmatpush1.msra.mxu0 0.0
    %431 = vmatprep.subr.mxu0 0.0
    %432 = vmatpush1.msra.mxu0 0.0
    %433 = vmatprep.subr.mxu0 0.0
    %434 = vmatpush1.msra.mxu0 0.0
    %435 = vmatprep.subr.mxu0 0.0
    %436 = vmatpush1.msra.mxu0 0.0
    %437 = vmatprep.subr.mxu0 0.0
    %438 = vmatpush1.msra.mxu0 0.0
    %439 = vmatprep.subr.mxu0 0.0
    %440 = vmatpush1.msra.mxu0 0.0
    %441 = vmatprep.subr.mxu0 0.0
    %442 = vmatpush1.msra.mxu0 0.0
    %443 = vmatprep.subr.mxu0 0.0
    %444 = vmatpush1.msra.mxu0 0.0
    %445 = vmatprep.subr.mxu0 0.0
    %446 = vmatpush1.msra.mxu0 0.0
    %447 = vmatprep.subr.mxu0 0.0
    %448 = vmatpush1.msra.mxu0 0.0
    %449 = vmatprep.subr.mxu0 0.0
    %450 = vmatpush1.msra.mxu0 0.0
    %451 = vmatprep.mubr.f32.mxu0 0.0
    %452 = vmatmul.mubr.f32.gmra.mrb[0].mxu0 %v61
    %v453 = vpop.f32.mrb[0].mxu0
    %v454 = vadd.f32 %v384, %v453
    %v455 = vpop.f32.mrb[0].mxu0
    %456 = vdwg.mxu0
    %v457 = vlaneseq
    %v458 = vshrl.u32 %v457, 7
    %v459 = vsub.s32 4, %v458
    %v460 = vrot.slane %v53, %v459
    %v461 = vadd.f32 %v454, %v460
    %v462 = vmax.f32 %v461, 0.0
    %v463 = vld [vmem:[%s7] sm:$0xff]
    %v464 = vld [vmem:[%s7 + $0x8] sm:$0xff]
    %v465 = vld [vmem:[%s7 + $0x10] sm:$0xff]
    %v466 = vld [vmem:[%s7 + $0x18] sm:$0xff]
    %v467 = vlaneseq
    %v468 = vshrl.u32 %v467, 7
    %v469 = vsub.s32 5, %v468
    %v470 = vrot.slane %v53, %v469
    %v472 = vsel %vm142, %v462, 0
    %474 = vmatprep.subr.mxu0 0.0
    %475 = vmatpush1.msra.mxu0 %v463
    %476 = vmatprep.subr.mxu0 0.0
    %477 = vmatpush1.msra.mxu0 %v464
    %478 = vmatprep.subr.mxu0 0.0
    %479 = vmatpush1.msra.mxu0 %v465
    %480 = vmatprep.subr.mxu0 0.0
    %481 = vmatpush1.msra.mxu0 %v466
    %482 = vmatprep.subr.mxu0 0.0
    %483 = vmatpush1.msra.mxu0 0.0
    %484 = vmatprep.subr.mxu0 0.0
    %485 = vmatpush1.msra.mxu0 0.0
    %486 = vmatprep.subr.mxu0 0.0
    %487 = vmatpush1.msra.mxu0 0.0
    %488 = vmatprep.subr.mxu0 0.0
    %489 = vmatpush1.msra.mxu0 0.0
    %490 = vmatprep.subr.mxu0 0.0
    %491 = vmatpush1.msra.mxu0 0.0
    %492 = vmatprep.subr.mxu0 0.0
    %493 = vmatpush1.msra.mxu0 0.0
    %494 = vmatprep.subr.mxu0 0.0
    %495 = vmatpush1.msra.mxu0 0.0
    %496 = vmatprep.subr.mxu0 0.0
    %497 = vmatpush1.msra.mxu0 0.0
    %498 = vmatprep.subr.mxu0 0.0
    %499 = vmatpush1.msra.mxu0 0.0
    %500 = vmatprep.subr.mxu0 0.0
    %501 = vmatpush1.msra.mxu0 0.0
    %502 = vmatprep.subr.mxu0 0.0
    %503 = vmatpush1.msra.mxu0 0.0
    %504 = vmatprep.subr.mxu0 0.0
    %505 = vmatpush1.msra.mxu0 0.0
    %506 = vmatprep.subr.mxu0 0.0
    %507 = vmatpush1.msra.mxu0 0.0
    %508 = vmatprep.subr.mxu0 0.0
    %509 = vmatpush1.msra.mxu0 0.0
    %510 = vmatprep.subr.mxu0 0.0
    %511 = vmatpush1.msra.mxu0 0.0
    %512 = vmatprep.subr.mxu0 0.0
    %513 = vmatpush1.msra.mxu0 0.0
    %514 = vmatprep.subr.mxu0 0.0
    %515 = vmatpush1.msra.mxu0 0.0
    %516 = vmatprep.subr.mxu0 0.0
    %517 = vmatpush1.msra.mxu0 0.0
    %518 = vmatprep.subr.mxu0 0.0
    %519 = vmatpush1.msra.mxu0 0.0
    %520 = vmatprep.subr.mxu0 0.0
    %521 = vmatpush1.msra.mxu0 0.0
    %522 = vmatprep.subr.mxu0 0.0
    %523 = vmatpush1.msra.mxu0 0.0
    %524 = vmatprep.subr.mxu0 0.0
    %525 = vmatpush1.msra.mxu0 0.0
    %526 = vmatprep.subr.mxu0 0.0
    %527 = vmatpush1.msra.mxu0 0.0
    %528 = vmatprep.subr.mxu0 0.0
    %529 = vmatpush1.msra.mxu0 0.0
    %530 = vmatprep.subr.mxu0 0.0
    %531 = vmatpush1.msra.mxu0 0.0
    %532 = vmatprep.subr.mxu0 0.0
    %533 = vmatpush1.msra.mxu0 0.0
    %534 = vmatprep.subr.mxu0 0.0
    %535 = vmatpush1.msra.mxu0 0.0
    %536 = vmatprep.subr.mxu0 0.0
    %537 = vmatpush1.msra.mxu0 0.0
    %538 = vmatprep.mubr.f32.mxu0 0.0
    %539 = vmatmul.mubr.f32.gmra.mrb[0].mxu0 %v472
    %v540 = vpop.f32.mrb[0].mxu0
    %v541 = vadd.f32 %v470, %v540
    %v542 = vpop.f32.mrb[0].mxu0
    %543 = vdwg.mxu0
    %v544 = vmax.f32 %v541, 0.0
    %v545 = vld [vmem:[%s8] sm:$0xff]
    %v546 = vld [vmem:[%s8 + $0x8] sm:$0xff]
    %v547 = vld [vmem:[%s8 + $0x10] sm:$0xff]
    %v548 = vld [vmem:[%s8 + $0x18] sm:$0xff]
    %v549 = vlaneseq
    %v550 = vshrl.u32 %v549, 7
    %v551 = vsub.s32 6, %v550
    %v552 = vrot.slane %v53, %v551
    %v554 = vsel %vm142, %v544, 0
    %556 = vmatprep.subr.mxu0 0.0
    %557 = vmatpush1.msra.mxu0 %v545
    %558 = vmatprep.subr.mxu0 0.0
    %559 = vmatpush1.msra.mxu0 %v546
    %560 = vmatprep.subr.mxu0 0.0
    %561 = vmatpush1.msra.mxu0 %v547
    %562 = vmatprep.subr.mxu0 0.0
    %563 = vmatpush1.msra.mxu0 %v548
    %564 = vmatprep.subr.mxu0 0.0
    %565 = vmatpush1.msra.mxu0 0.0
    %566 = vmatprep.subr.mxu0 0.0
    %567 = vmatpush1.msra.mxu0 0.0
    %568 = vmatprep.subr.mxu0 0.0
    %569 = vmatpush1.msra.mxu0 0.0
    %570 = vmatprep.subr.mxu0 0.0
    %571 = vmatpush1.msra.mxu0 0.0
    %572 = vmatprep.subr.mxu0 0.0
    %573 = vmatpush1.msra.mxu0 0.0
    %574 = vmatprep.subr.mxu0 0.0
    %575 = vmatpush1.msra.mxu0 0.0
    %576 = vmatprep.subr.mxu0 0.0
    %577 = vmatpush1.msra.mxu0 0.0
    %578 = vmatprep.subr.mxu0 0.0
    %579 = vmatpush1.msra.mxu0 0.0
    %580 = vmatprep.subr.mxu0 0.0
    %581 = vmatpush1.msra.mxu0 0.0
    %582 = vmatprep.subr.mxu0 0.0
    %583 = vmatpush1.msra.mxu0 0.0
    %584 = vmatprep.subr.mxu0 0.0
    %585 = vmatpush1.msra.mxu0 0.0
    %586 = vmatprep.subr.mxu0 0.0
    %587 = vmatpush1.msra.mxu0 0.0
    %588 = vmatprep.subr.mxu0 0.0
    %589 = vmatpush1.msra.mxu0 0.0
    %590 = vmatprep.subr.mxu0 0.0
    %591 = vmatpush1.msra.mxu0 0.0
    %592 = vmatprep.subr.mxu0 0.0
    %593 = vmatpush1.msra.mxu0 0.0
    %594 = vmatprep.subr.mxu0 0.0
    %595 = vmatpush1.msra.mxu0 0.0
    %596 = vmatprep.subr.mxu0 0.0
    %597 = vmatpush1.msra.mxu0 0.0
    %598 = vmatprep.subr.mxu0 0.0
    %599 = vmatpush1.msra.mxu0 0.0
    %600 = vmatprep.subr.mxu0 0.0
    %601 = vmatpush1.msra.mxu0 0.0
    %602 = vmatprep.subr.mxu0 0.0
    %603 = vmatpush1.msra.mxu0 0.0
    %604 = vmatprep.subr.mxu0 0.0
    %605 = vmatpush1.msra.mxu0 0.0
    %606 = vmatprep.subr.mxu0 0.0
    %607 = vmatpush1.msra.mxu0 0.0
    %608 = vmatprep.subr.mxu0 0.0
    %609 = vmatpush1.msra.mxu0 0.0
    %610 = vmatprep.subr.mxu0 0.0
    %611 = vmatpush1.msra.mxu0 0.0
    %612 = vmatprep.subr.mxu0 0.0
    %613 = vmatpush1.msra.mxu0 0.0
    %614 = vmatprep.subr.mxu0 0.0
    %615 = vmatpush1.msra.mxu0 0.0
    %616 = vmatprep.subr.mxu0 0.0
    %617 = vmatpush1.msra.mxu0 0.0
    %618 = vmatprep.subr.mxu0 0.0
    %619 = vmatpush1.msra.mxu0 0.0
    %620 = vmatprep.mubr.f32.mxu0 0.0
    %621 = vmatmul.mubr.f32.gmra.mrb[0].mxu0 %v554
    %v622 = vpop.f32.mrb[0].mxu0
    %v623 = vadd.f32 %v552, %v622
    %v624 = vpop.f32.mrb[0].mxu0
    %625 = vdwg.mxu0
    %626 = vst.msk [vmem:[#allocation5] sm:$0xff] %vm59, %v295
    %627 = vst.msk [vmem:[#allocation6] sm:$0xff] %vm59, %v623
    %v628 = vmul.f32 %v53, 1.442695
    %v629 = vpow.pop %v628
    %v630 = vlaneseq
    %v631 = vshrl.u32 %v630, 7
    %v632 = vsub.s32 3, %v631
    %v633 = vrot.slane %v629, %v632
    %vm634 = vcmask 130048
    %635 = vst.msk [vmem:[#allocation8] sm:$0xff] %vm634, %v633
    // Predicated region
    $region46: #{tpu_custom_call.1} parent=1 // pred_check
      _
    $region47: #{tpu_custom_call.1} parent=1 // pred_check_branch
      %637 = sbr.rel (0) target = $region49
    $region48: #{tpu_custom_call.1} parent=1 // pred_region
      %s639 = ssub.s32 128, 128
      %640 = vsyncadd [#allocation4], %s639
      %s642 = sshll.u32 [#allocation5], 4
      %s643 = int_to_ptr.vmem [resolvable:$true] %s642
      %645 = dma.vmem_to_hbm [thread:$0]  %s643, 128, %s10, [#allocation4]
    $region49: #{tpu_custom_call.1} parent=1 // pred_fallthru
      _
    // Predicated region
    $region50: #{tpu_custom_call.1} parent=1 // pred_check
      _
    $region51: #{tpu_custom_call.1} parent=1 // pred_check_branch
      %647 = sbr.rel (0) target = $region53
    $region52: #{tpu_custom_call.1} parent=1 // pred_region
      %s649 = ssub.s32 128, 128
      %650 = vsyncadd [#allocation7], %s649
      %s652 = sshll.u32 [#allocation6], 4
      %s653 = int_to_ptr.vmem [resolvable:$true] %s652
      %655 = dma.vmem_to_hbm [thread:$0]  %s653, 128, %s11, [#allocation7]
    $region53: #{tpu_custom_call.1} parent=1 // pred_fallthru
      _
    // Predicated region
    $region54: #{tpu_custom_call.1} parent=1 // pred_check
      _
    $region55: #{tpu_custom_call.1} parent=1 // pred_check_branch
      %657 = sbr.rel (0) target = $region57
    $region56: #{tpu_custom_call.1} parent=1 // pred_region
      %s659 = ssub.s32 128, 128
      %660 = vsyncadd [#allocation7], %s659
      %s662 = sshll.u32 [#allocation8], 4
      %s663 = int_to_ptr.vmem [resolvable:$true] %s662
      %665 = dma.vmem_to_hbm [thread:$0]  %s663, 128, %s12, [#allocation7]
    $region57: #{tpu_custom_call.1} parent=1 // pred_fallthru
      _
    // Predicated region
    $region58: #{tpu_custom_call.1} parent=1 // pred_check
      _
    $region59: #{tpu_custom_call.1} parent=1 // pred_check_branch
      %667 = sbr.rel (0) target = $region61
    $region60: #{tpu_custom_call.1} parent=1 // pred_region
      %668 = dma.done [#allocation4], 128
    $region61: #{tpu_custom_call.1} parent=1 // pred_fallthru
      _
    // Predicated region
    $region62: #{tpu_custom_call.1} parent=1 // pred_check
      _
    $region63: #{tpu_custom_call.1} parent=1 // pred_check_branch
      %670 = sbr.rel (0) target = $region65
    $region64: #{tpu_custom_call.1} parent=1 // pred_region
      %671 = dma.done [#allocation7], 128
    $region65: #{tpu_custom_call.1} parent=1 // pred_fallthru
      _
    // Predicated region
    $region66: #{tpu_custom_call.1} parent=1 // pred_check
      _
    $region67: #{tpu_custom_call.1} parent=1 // pred_check_branch
      %673 = sbr.rel (0) target = $region69
    $region68: #{tpu_custom_call.1} parent=1 // pred_region
      %674 = dma.done [#allocation7], 128
    $region69: #{tpu_custom_call.1} parent=1 // pred_fallthru
      _
    %675 = vsyncpa [#allocation3], 1
    %676 = vsyncpa [#allocation4], 1
    %677 = vsyncpa [#allocation7], 1

</llo_original>
